<compile_context>
chip_gen: v6e
topology: v6e:2x2x1
jax: 0.10.0
libtpu: 0.0.40
codegen_flags: <defaults>
</compile_context>

<pallas_src>
import math

import jax
import jax.numpy as jnp
from jax.experimental import pallas as pl
from jax.experimental.pallas import tpu as pltpu


def make_positional_encoding_table(d_model, max_len=5000, dtype=jnp.float32):
    """Deterministic sin/cos table, identical to the PyTorch __init__."""
    assert d_model % 2 == 0, "PositionalEncoding assumes an even d_model"
    position = jnp.arange(0, max_len, dtype=jnp.float32)[:, None]            # (L, 1)
    div_term = jnp.exp(
        jnp.arange(0, d_model, 2, dtype=jnp.float32)
        * (-math.log(10000.0) / d_model)
    )                                                                         # (D/2,)
    angles = position * div_term                                              # (L, D/2)
    # interleave: pe[:, 0::2] = sin, pe[:, 1::2] = cos
    pe = jnp.stack([jnp.sin(angles), jnp.cos(angles)], axis=-1).reshape(max_len, d_model)
    return pe.astype(dtype)


def _pe_add_kernel(x_ref, pe_ref, o_ref):
    # x_ref / o_ref : (TS, TB, D) VMEM tile
    # pe_ref        : (TS, 1, D)  VMEM tile (pe rows for this seq tile)
    # Sublane broadcast of pe across the batch axis — no materialized slab.
    o_ref[...] = x_ref[...] + pe_ref[...]


def _vmem_capacity_bytes():
    try:
        return int(pltpu.get_tpu_info().vmem_capacity_bytes)
    except Exception:
        return 64 << 20  # conservative fallback (v7x per-TensorCore VMEM)


def _choose_tiles(S, B, D, itemsize, *, target_block_bytes, vmem_budget_bytes):
    """Pick (seq_tile, batch_tile): one x block ~= per-block budget, with
    >= 2-4 sequence tiles when S allows (keeps both v7x TensorCores fed)."""
    per_block = max(min(target_block_bytes, vmem_budget_bytes // 6),
                    8 * D * itemsize)
    # Batch (sublane) tiling only when TS=8 with the full batch already blows
    # the budget; a sub-extent sublane tile must be a multiple of 8.
    TB = B
    if B > 8 and (8 * B * D * itemsize) > per_block:
        TB = max(8, ((per_block // (8 * D * itemsize)) // 8) * 8)
        TB = min(TB, (B // 8) * 8)
    row_bytes = TB * D * itemsize
    TS = max(1, min(S, per_block // max(row_bytes, 1)))
    # Guarantee several sequence tiles for megacore / 2-TC sharding.
    if S >= 32:
        TS = min(TS, max(8, pl.cdiv(S, 4)))
    elif S >= 16:
        TS = min(TS, max(8, pl.cdiv(S, 2)))
    return TS, TB


def positional_encoding_forward(x, pe_table, *, seq_tile=None, batch_tile=None,
                                target_block_bytes=8 << 20, donate_x=False):
    """x: (seq_len, batch, d_model).  pe_table: (max_len, d_model).

    Eval-mode forward (dropout = identity).  Set donate_x=True only when the
    caller also donates x at the jit boundary (otherwise XLA inserts a copy).
    """
    S, B, D = x.shape
    assert pe_table.shape[0] >= S and pe_table.shape[1] == D

    capacity = _vmem_capacity_bytes()
    vmem_budget = (capacity * 3) // 4
    TS, TB = _choose_tiles(S, B, D, x.dtype.itemsize,
                           target_block_bytes=target_block_bytes,
                           vmem_budget_bytes=vmem_budget)
    if seq_tile is not None:
        TS = min(seq_tile, S)
    if batch_tile is not None:
        TB = min(batch_tile, B)

    # One-time cast of the small table so the in-kernel add runs natively in
    # x's dtype (bf16 on v6e/v7x); free metadata reshape to (max_len, 1, D).
    pe_in = pe_table.astype(x.dtype).reshape(pe_table.shape[0], 1, D)

    grid = (pl.cdiv(S, TS), pl.cdiv(B, TB))

    x_block_bytes = TS * TB * D * x.dtype.itemsize
    pe_block_bytes = TS * D * x.dtype.itemsize
    need = 4 * x_block_bytes + 2 * pe_block_bytes          # dbl-buffered in/out + pe
    vmem_limit = int(min(capacity, max(need + (4 << 20), 32 << 20)))

    cost = pl.CostEstimate(
        flops=S * B * D,
        transcendentals=0,
        bytes_accessed=2 * S * B * D * x.dtype.itemsize
                       + grid[1] * S * D * x.dtype.itemsize,
    )

    return pl.pallas_call(
        _pe_add_kernel,
        out_shape=jax.ShapeDtypeStruct((S, B, D), x.dtype),
        grid_spec=pltpu.PrefetchScalarGridSpec(
            num_scalar_prefetch=0,
            grid=grid,
            in_specs=[
                pl.BlockSpec((TS, TB, D), lambda i, j: (i, j, 0)),   # x tile
                pl.BlockSpec((TS, 1, D), lambda i, j: (i, 0, 0)),    # pe rows
            ],
            out_specs=pl.BlockSpec((TS, TB, D), lambda i, j: (i, j, 0)),
        ),
        compiler_params=pltpu.CompilerParams(
            # Pure elementwise over (seq, batch) tiles -> fully parallel; lets
            # v7x shard tiles across its 2 TensorCores.
            dimension_semantics=("parallel", "parallel"),
            vmem_limit_bytes=vmem_limit,
        ),
        input_output_aliases=({0: 0} if donate_x else {}),
        cost_estimate=cost,
    )(x, pe_in)


if __name__ == "__main__":
    # Small shapes consistent with the module: seq=8, batch=2, d_model=32
    seq_len, batch, d_model = 8, 2, 32
    max_len = 64  # small synthetic max_len (module default is 5000)

    key = jax.random.PRNGKey(0)
    x = jax.random.normal(key, (seq_len, batch, d_model), dtype=jnp.float32)
    pe_table = make_positional_encoding_table(d_model, max_len=max_len)

    fwd = jax.jit(positional_encoding_forward,
                  static_argnames=("seq_tile", "batch_tile",
                                   "target_block_bytes", "donate_x"))

    out = jax.block_until_ready(fwd(x, pe_table))
    ref = x + pe_table[:seq_len][:, None, :]
    assert out.shape == (seq_len, batch, d_model)
    assert jnp.allclose(out, ref, atol=1e-6, rtol=1e-6), "mismatch vs reference"

    # Multi-tile pipelined path: auto tile choice (>= 4 seq tiles) and an
    # explicit seq_tile with a partial (masked) last block.
    S2, B2, D2 = 40, 2, 32
    x2 = jax.random.normal(jax.random.fold_in(key, 1), (S2, B2, D2), dtype=jnp.float32)
    pe2 = make_positional_encoding_table(D2, max_len=128)
    ref2 = x2 + pe2[:S2][:, None, :]
    out2 = jax.block_until_ready(fwd(x2, pe2))
    assert jnp.allclose(out2, ref2, atol=1e-6, rtol=1e-6), "mismatch (auto tiles)"
    out3 = jax.block_until_ready(fwd(x2, pe2, seq_tile=16))
    assert jnp.allclose(out3, ref2, atol=1e-6, rtol=1e-6), "mismatch (partial block)"

    # Donated / aliased path: x's HBM buffer is reused for the output.
    x3 = jax.random.normal(jax.random.fold_in(key, 2), (S2, B2, D2), dtype=jnp.float32)
    ref3 = x3 + pe2[:S2][:, None, :]
    fwd_donated = jax.jit(
        lambda xx, pp: positional_encoding_forward(xx, pp, donate_x=True),
        donate_argnums=(0,))
    out4 = jax.block_until_ready(fwd_donated(x3, pe2))   # x3 must not be reused after
    assert jnp.allclose(out4, ref3, atol=1e-6, rtol=1e-6), "mismatch (donated/aliased)"

    print("KERNEL_OK")
</pallas_src>

<mosaic_0001>
module attributes {stable_mosaic.version = 11 : i64} {
  func.func @_pe_add_kernel(%arg0: i32, %arg1: i32, %arg2: memref<8x2x32xf32, #tpu.memory_space<vmem>>, %arg3: memref<8x1x32xf32, #tpu.memory_space<vmem>>, %arg4: memref<8x2x32xf32, #tpu.memory_space<vmem>>) attributes {dimension_semantics = [#tpu.dimension_semantics<parallel>, #tpu.dimension_semantics<parallel>], iteration_bounds = array<i64: 1, 1>, scalar_prefetch = 0 : i64, scratch_operands = 0 : i64, tpu.core_type = #tpu.core_type<tc>, window_params = [{transform_indices = @transform_0, window_bounds = array<i64: 8, 2, 32>}, {transform_indices = @transform_1, window_bounds = array<i64: 8, 1, 32>}, {transform_indices = @transform_2, window_bounds = array<i64: 8, 2, 32>}]} {
    %c0 = arith.constant 0 : index
    %c0_0 = arith.constant 0 : index
    %c0_1 = arith.constant 0 : index
    %0 = vector.load %arg2[%c0, %c0_0, %c0_1] : memref<8x2x32xf32, #tpu.memory_space<vmem>>, vector<8x2x32xf32>
    %c0_2 = arith.constant 0 : index
    %c0_3 = arith.constant 0 : index
    %c0_4 = arith.constant 0 : index
    %1 = vector.load %arg3[%c0_2, %c0_3, %c0_4] : memref<8x1x32xf32, #tpu.memory_space<vmem>>, vector<8x1x32xf32>
    %2 = vector.broadcast %1 : vector<8x1x32xf32> to vector<8x2x32xf32>
    %3 = arith.addf %0, %2 : vector<8x2x32xf32>
    %c0_5 = arith.constant 0 : index
    %c0_6 = arith.constant 0 : index
    %c0_7 = arith.constant 0 : index
    %4 = vector.load %arg4[%c0_5, %c0_6, %c0_7] : memref<8x2x32xf32, #tpu.memory_space<vmem>>, vector<8x2x32xf32>
    tpu.vector_store %arg4[%c0_5, %c0_6, %c0_7], %3 {strides = array<i32>} : memref<8x2x32xf32, #tpu.memory_space<vmem>>, vector<8x2x32xf32>,
    return
  }
  func.func @transform_0(%arg0: i32, %arg1: i32) -> (i32, i32, i32) {
    %c0_i32 = arith.constant 0 : i32
    %c0_i32_0 = arith.constant 0 : i32
    return %arg0, %arg1, %c0_i32 : i32, i32, i32
  }
  func.func @transform_1(%arg0: i32, %arg1: i32) -> (i32, i32, i32) {
    %c0_i32 = arith.constant 0 : i32
    %c0_i32_0 = arith.constant 0 : i32
    %c0_i32_1 = arith.constant 0 : i32
    return %arg0, %c0_i32, %c0_i32_0 : i32, i32, i32
  }
  func.func @transform_2(%arg0: i32, %arg1: i32) -> (i32, i32, i32) {
    %c0_i32 = arith.constant 0 : i32
    %c0_i32_0 = arith.constant 0 : i32
    return %arg0, %arg1, %c0_i32 : i32, i32, i32
  }
}

</mosaic_0001>

<llo_original>
// kernel: positional_encoding_forward.1
$region0: #{positional_encoding_forward.1}
  #allocation0 [shape = 'u32[]', space=smem, size = 0x4, offset = 0x4, fixed_abs, tag = 'smem constant byte address 0x4 - core index']
  #allocation1 [shape = 'u32[144,128]{1,0:T(1,128)}', space=vmem, size = 0x12000, scoped, tag = 'internal scratch']
  %s0 = inlined_call_operand.vmem [shape: f32[8,2,32], index: 0, kind: input, shape index: {}]
  %s1 = inlined_call_operand.vmem [shape: f32[64,1,32], index: 1, kind: input, shape index: {}]
  %s2 = inlined_call_operand.hbm [shape: f32[8,2,32], index: 2, kind: output, shape index: {}]
  %s3 = sld [smem:[#allocation0]]
  $region18: #{positional_encoding_forward.1} parent=0
    _
  %s5 = ssub.s32 1, %s3
  %s6 = scalar_select 0, %s5, %s3
  $region1: #{positional_encoding_forward.1} parent=0
    #allocation2 [shape = 'u8[8192]{0}', space=vmem, size = 0x2000, scoped, tag = 'output window, operand 0, single buffered']
    #allocation3 [shape = 's32[1]{0}', space=sflag, size = 0x4, scoped, tag = 'scoped memory for positional_encoding_forward.1']
    %7 = vsyncpa [#allocation3], 0
    // Predicated region
    $region2: #{positional_encoding_forward.1} parent=1 // pred_check
      _
    $region3: #{positional_encoding_forward.1} parent=1 // pred_check_branch
      %9 = sbr.rel (0) target = $region5
    $region4: #{positional_encoding_forward.1} parent=1 // pred_region
      _
    $region5: #{positional_encoding_forward.1} parent=1 // pred_fallthru
      _
    // Predicated region
    $region6: #{positional_encoding_forward.1} parent=1 // pred_check
      _
    $region7: #{positional_encoding_forward.1} parent=1 // pred_check_branch
      %11 = sbr.rel (0) target = $region9
    $region8: #{positional_encoding_forward.1} parent=1 // pred_region
      _
    $region9: #{positional_encoding_forward.1} parent=1 // pred_fallthru
      _
    %v12 = vld [vmem:[%s0] sm:$0x3]
    %v13 = vld [vmem:[%s0 + $0x2] sm:$0x3]
    %v14 = vld [vmem:[%s0 + $0x4] sm:$0x3]
    %v15 = vld [vmem:[%s0 + $0x6] sm:$0x3]
    %v16 = vld [vmem:[%s0 + $0x8] sm:$0x3]
    %v17 = vld [vmem:[%s0 + $0xa] sm:$0x3]
    %v18 = vld [vmem:[%s0 + $0xc] sm:$0x3]
    %v19 = vld [vmem:[%s0 + $0xe] sm:$0x3]
    %v20 = vld [vmem:[%s1] sm:$0x1]
    %v21 = vld [vmem:[%s1 + $0x1] sm:$0x1]
    %v22 = vld [vmem:[%s1 + $0x2] sm:$0x1]
    %v23 = vld [vmem:[%s1 + $0x3] sm:$0x1]
    %v24 = vld [vmem:[%s1 + $0x4] sm:$0x1]
    %v25 = vld [vmem:[%s1 + $0x5] sm:$0x1]
    %v26 = vld [vmem:[%s1 + $0x6] sm:$0x1]
    %v27 = vld [vmem:[%s1 + $0x7] sm:$0x1]
    %v36 = vlaneseq
    %v37 = vshrl.u32 %v36, 7
    %v38 = vsub.s32 0, %v37
    %v39 = vrot.slane %v20, %v38
    %v40 = vlaneseq
    %v41 = vshrl.u32 %v40, 7
    %v42 = vsub.s32 0, %v41
    %v43 = vrot.slane %v21, %v42
    %v44 = vlaneseq
    %v45 = vshrl.u32 %v44, 7
    %v46 = vsub.s32 0, %v45
    %v47 = vrot.slane %v22, %v46
    %v48 = vlaneseq
    %v49 = vshrl.u32 %v48, 7
    %v50 = vsub.s32 0, %v49
    %v51 = vrot.slane %v23, %v50
    %v52 = vlaneseq
    %v53 = vshrl.u32 %v52, 7
    %v54 = vsub.s32 0, %v53
    %v55 = vrot.slane %v24, %v54
    %v56 = vlaneseq
    %v57 = vshrl.u32 %v56, 7
    %v58 = vsub.s32 0, %v57
    %v59 = vrot.slane %v25, %v58
    %v60 = vlaneseq
    %v61 = vshrl.u32 %v60, 7
    %v62 = vsub.s32 0, %v61
    %v63 = vrot.slane %v26, %v62
    %v64 = vlaneseq
    %v65 = vshrl.u32 %v64, 7
    %v66 = vsub.s32 0, %v65
    %v67 = vrot.slane %v27, %v66
    %v76 = vadd.f32 %v12, %v39
    %v77 = vadd.f32 %v13, %v43
    %v78 = vadd.f32 %v14, %v47
    %v79 = vadd.f32 %v15, %v51
    %v80 = vadd.f32 %v16, %v55
    %v81 = vadd.f32 %v17, %v59
    %v82 = vadd.f32 %v18, %v63
    %v83 = vadd.f32 %v19, %v67
    %vm84 = vcmask 254976
    %85 = vst.msk [vmem:[#allocation2] sm:$0x3] %vm84, %v76
    %86 = vst.msk [vmem:[#allocation2 + $0x2] sm:$0x3] %vm84, %v77
    %87 = vst.msk [vmem:[#allocation2 + $0x4] sm:$0x3] %vm84, %v78
    %88 = vst.msk [vmem:[#allocation2 + $0x6] sm:$0x3] %vm84, %v79
    %89 = vst.msk [vmem:[#allocation2 + $0x8] sm:$0x3] %vm84, %v80
    %90 = vst.msk [vmem:[#allocation2 + $0xa] sm:$0x3] %vm84, %v81
    %91 = vst.msk [vmem:[#allocation2 + $0xc] sm:$0x3] %vm84, %v82
    %92 = vst.msk [vmem:[#allocation2 + $0xe] sm:$0x3] %vm84, %v83
    // Predicated region
    $region10: #{positional_encoding_forward.1} parent=1 // pred_check
      _
    $region11: #{positional_encoding_forward.1} parent=1 // pred_check_branch
      %94 = sbr.rel (0) target = $region13
    $region12: #{positional_encoding_forward.1} parent=1 // pred_region
      %s96 = ssub.s32 256, 256
      %97 = vsyncadd [#allocation3], %s96
      %s98 = sshll.u32 [#allocation2], 4
      %s99 = int_to_ptr.vmem [resolvable:$true] %s98
      %104 = dma.vmem_to_hbm [thread:$0]  %s99, 256, %s2, [#allocation3], 32, 32, 2
    $region13: #{positional_encoding_forward.1} parent=1 // pred_fallthru
      _
    // Predicated region
    $region14: #{positional_encoding_forward.1} parent=1 // pred_check
      _
    $region15: #{positional_encoding_forward.1} parent=1 // pred_check_branch
      %106 = sbr.rel (0) target = $region17
    $region16: #{positional_encoding_forward.1} parent=1 // pred_region
      %107 = dma.done [#allocation3], 256
    $region17: #{positional_encoding_forward.1} parent=1 // pred_fallthru
      _
    %108 = vsyncpa [#allocation3], 1

</llo_original>
